<compile_context>
chip_gen: v7x
topology: tpu7x:2x2x1
jax: 0.10.0
libtpu: 0.0.40
codegen_flags: <defaults>
</compile_context>

<pallas_src>
import numpy as np

import jax
import jax.numpy as jnp
from jax.experimental import pallas as pl
from jax.experimental.pallas import tpu as pltpu


def _tpu_generation() -> int:
    """Best-effort TPU generation detection (0 if unknown)."""
    try:
        kind = jax.devices()[0].device_kind.lower()
    except Exception:
        return 0
    for g in (7, 6, 5, 4, 3, 2):
        if f"v{g}" in kind:
            return g
    return 0


def _build_masks_and_tiles(L, L_out, kernel_size, stride, padding, tn):
    """Host-side precompute of deduplicated banded pooling masks.

    Returns:
      masks: np.float32 array (n_unique, W, tn) with entries in {0, 1/k}.
      tiles: list of (c0, cols, lo, mask_index) -- all static Python ints.
      W:     uniform (lane-aligned-friendly) band width.
    """
    span = (tn - 1) * stride + kernel_size        # band needed by a full tile
    slack = (-padding) % 128                      # alignment slack below raw_lo
    W = span + slack
    W = -(-W // 128) * 128                        # round band width up to 128
    W = min(W, L)

    n_col_tiles = -(-L_out // tn)
    uniq = {}
    masks = []
    tiles = []
    for j in range(n_col_tiles):
        c0 = j * tn
        cols = min(tn, L_out - c0)
        raw_lo = c0 * stride - padding            # unpadded coord of first tap
        lo = (raw_lo // 128) * 128                # lane-align band start
        lo = max(0, min(lo, L - W))               # keep band inside [0, L)
        # Weight condition:  M[r, c] = 1/k  iff  0 <= (lo + r) - ((c0+c)*s - p) < k
        offset = lo + padding - c0 * stride
        key = (offset, cols)
        if key not in uniq:
            uniq[key] = len(masks)
            r = np.arange(W, dtype=np.int64).reshape(W, 1)
            c = np.arange(tn, dtype=np.int64).reshape(1, tn)
            di = offset + r - stride * c
            m = ((di >= 0) & (di < kernel_size) & (c < cols)).astype(np.float32)
            masks.append(m / float(kernel_size))  # count_include_pad=True => /k
        tiles.append((c0, cols, lo, uniq[key]))

    return np.stack(masks, axis=0), tiles, W


def _make_avgpool1d_kernel(col_tiles, band_w):
    """Kernel specialized for static column-tile layout (all bounds static)."""

    def kernel(x_ref, m_ref, o_ref):
        # x_ref: (tm, L)   m_ref: (n_unique, W, tn) resident   o_ref: (tm, L_out)
        for c0, cols, lo, uidx in col_tiles:      # static unrolled loop
            xb = x_ref[:, pl.ds(lo, band_w)]      # lane-aligned static band slice
            m = m_ref[uidx]                       # resident (W, tn) pooling mask
            acc = jnp.dot(xb.astype(jnp.float32), m,
                          preferred_element_type=jnp.float32)
            o_ref[:, pl.ds(c0, cols)] = acc[:, :cols].astype(o_ref.dtype)

    return kernel


def avg_pool1d(x, kernel_size: int, stride: int, padding: int):
    """Matches torch.nn.AvgPool1d(kernel_size, stride, padding) on (B, C, L)."""
    B, C, L = x.shape
    L_out = (L + 2 * padding - kernel_size) // stride + 1
    R = B * C
    x2 = x.reshape(R, L)                          # free reshape (no data movement)

    gen = _tpu_generation()
    # Output-column tile: fill the 256-wide MXU on v6e/v7x; 128 elsewhere.
    tn_pref = 256 if gen in (0, 6, 7) else 128
    tn = L_out if L_out <= tn_pref else tn_pref

    # VMEM budgets: v7x has 64 MiB physical VMEM per TC, v5e/v6e have 128 MiB.
    if gen == 7:
        input_budget = 4 * 1024 * 1024
        vmem_limit = 48 * 1024 * 1024
    else:
        input_budget = 6 * 1024 * 1024
        vmem_limit = 64 * 1024 * 1024

    # Row tile: as many rows as fit `input_budget` per (double-buffered) slab,
    # multiple of 8, and split into >=2 tiles when R >= 16 so both TensorCores
    # get work on dual-core chips.
    itemsize = jnp.dtype(x.dtype).itemsize
    tm = max(8, input_budget // max(1, L * itemsize))
    if R >= 16:
        half = -(-R // 2)
        half = -(-half // 8) * 8
        tm = min(tm, half)
    tm = min(tm, R)
    if tm < R:
        tm = max(8, (tm // 8) * 8)
    n_row_tiles = pl.cdiv(R, tm)

    masks_np, col_tiles, W = _build_masks_and_tiles(
        L, L_out, kernel_size, stride, padding, tn)
    masks = jnp.asarray(masks_np)

    kernel = _make_avgpool1d_kernel(col_tiles, W)

    flops = 2 * R * len(col_tiles) * W * tn
    bytes_accessed = (R * L * itemsize + R * L_out * itemsize
                      + int(masks_np.nbytes))

    out = pl.pallas_call(
        kernel,
        out_shape=jax.ShapeDtypeStruct((R, L_out), x.dtype),
        grid=(n_row_tiles,),
        in_specs=[
            pl.BlockSpec((tm, L), lambda i: (i, 0)),
            # Constant block index => masks are DMA'd once and stay resident.
            pl.BlockSpec(masks_np.shape, lambda i: (0, 0, 0)),
        ],
        out_specs=pl.BlockSpec((tm, L_out), lambda i: (i, 0)),
        compiler_params=pltpu.CompilerParams(
            dimension_semantics=("parallel",),
            vmem_limit_bytes=vmem_limit,
        ),
        cost_estimate=pl.CostEstimate(
            flops=flops, transcendentals=0, bytes_accessed=bytes_accessed),
    )(x2, masks)

    return out.reshape(B, C, L_out)


if __name__ == "__main__":
    kernel_size = 4
    stride = 2
    padding = 1

    # Small deterministic input consistent with (batch, channels, length).
    B, C, L = 2, 4, 16
    key = jax.random.PRNGKey(0)
    x = jax.random.normal(key, (B, C, L), dtype=jnp.float32)

    out = avg_pool1d(x, kernel_size, stride, padding)
    out = jax.block_until_ready(out)

    # Reference (pure JAX, count_include_pad=True like the PyTorch default).
    x_pad = jnp.pad(x, ((0, 0), (0, 0), (padding, padding)))
    L_out = (L + 2 * padding - kernel_size) // stride + 1
    ref = jnp.stack(
        [
            x_pad[:, :, j * stride: j * stride + kernel_size].mean(axis=-1)
            for j in range(L_out)
        ],
        axis=-1,
    )
    assert out.shape == (B, C, L_out), out.shape
    assert jnp.allclose(out, ref, atol=1e-5, rtol=1e-5), "mismatch vs reference"

    print("KERNEL_OK")
</pallas_src>

<mosaic_0001>
module attributes {stable_mosaic.version = 11 : i64} {
  func.func @kernel(%arg0: i32, %arg1: memref<8x16xf32, #tpu.memory_space<vmem>>, %arg2: memref<1x16x8xf32, #tpu.memory_space<vmem>>, %arg3: memref<8x8xf32, #tpu.memory_space<vmem>>) attributes {dimension_semantics = [#tpu.dimension_semantics<parallel>], iteration_bounds = array<i64: 1>, scalar_prefetch = 0 : i64, scratch_operands = 0 : i64, tpu.core_type = #tpu.core_type<tc>, window_params = [{transform_indices = @transform_0, window_bounds = array<i64: 8, 16>}, {pipeline_mode = #tpu.pipeline_mode<synchronous>, transform_indices = @transform_1, window_bounds = array<i64: 1, 16, 8>}, {transform_indices = @transform_2, window_bounds = array<i64: 8, 8>}]} {
    %c0 = arith.constant 0 : index
    %c0_0 = arith.constant 0 : index
    %0 = vector.load %arg1[%c0, %c0_0] : memref<8x16xf32, #tpu.memory_space<vmem>>, vector<8x16xf32>
    %c0_1 = arith.constant 0 : index
    %c0_2 = arith.constant 0 : index
    %c0_3 = arith.constant 0 : index
    %1 = vector.load %arg2[%c0_1, %c0_2, %c0_3] : memref<1x16x8xf32, #tpu.memory_space<vmem>>, vector<1x16x8xf32>
    %2 = vector.shape_cast %1 : vector<1x16x8xf32> to vector<16x8xf32>
    %cst = arith.constant dense<0.000000e+00> : vector<8x8xf32>
    %3 = tpu.matmul %0, %2, %cst {dimension_numbers = #tpu.dot_dimension_numbers<[1], [0], [0], [1], [0, 0, 1, 1], [], []>} : vector<8x16xf32>, vector<16x8xf32>, vector<8x8xf32> -> vector<8x8xf32>
    %c0_4 = arith.constant 0 : index
    %c0_5 = arith.constant 0 : index
    %4 = vector.load %arg3[%c0_4, %c0_5] : memref<8x8xf32, #tpu.memory_space<vmem>>, vector<8x8xf32>
    tpu.vector_store %arg3[%c0_4, %c0_5], %3 {strides = array<i32>} : memref<8x8xf32, #tpu.memory_space<vmem>>, vector<8x8xf32>,
    return
  }
  func.func @transform_0(%arg0: i32) -> (i32, i32) {
    %c0_i32 = arith.constant 0 : i32
    %c0_i32_0 = arith.constant 0 : i32
    return %arg0, %c0_i32 : i32, i32
  }
  func.func @transform_1(%arg0: i32) -> (i32, i32, i32) {
    %c0_i32 = arith.constant 0 : i32
    %c0_i32_0 = arith.constant 0 : i32
    %c0_i32_1 = arith.constant 0 : i32
    %c0_i32_2 = arith.constant 0 : i32
    return %c0_i32, %c0_i32_0, %c0_i32_1 : i32, i32, i32
  }
  func.func @transform_2(%arg0: i32) -> (i32, i32) {
    %c0_i32 = arith.constant 0 : i32
    %c0_i32_0 = arith.constant 0 : i32
    return %arg0, %c0_i32 : i32, i32
  }
}

</mosaic_0001>

<llo_original>
// kernel: tpu_custom_call.1
$region0: #{tpu_custom_call.1}
  #allocation0 [shape = 'u32[]', space=smem, size = 0x4, offset = 0x4, fixed_abs, tag = 'smem constant byte address 0x4 - core index']
  #allocation1 [shape = 'u32[144,128]{1,0:T(1,128)}', space=vmem, size = 0x12000, scoped, tag = 'internal scratch']
  %s0 = inlined_call_operand.hbm [shape: f32[8,16], index: 0, kind: input, shape index: {}]
  %s1 = inlined_call_operand.hbm [shape: f32[1,16,8], index: 1, kind: input, shape index: {}]
  %s2 = inlined_call_operand.hbm [shape: f32[8,8], index: 2, kind: output, shape index: {}]
  %s3 = sld [smem:[#allocation0]]
  $region26: #{tpu_custom_call.1} parent=0
    _
  %s5 = ssub.s32 1, %s3
  %s6 = scalar_select 0, %s5, %s3
  $region1: #{tpu_custom_call.1} parent=0
    #allocation2 [shape = 'u8[4096]{0}', space=vmem, size = 0x1000, scoped, tag = 'input window, operand 0, single buffered']
    #allocation3 [shape = 's32[1]{0}', space=sflag, size = 0x4, scoped, tag = 'scoped memory for tpu_custom_call.1']
    #allocation4 [shape = 's32[1]{0}', space=sflag, size = 0x4, scoped, tag = 'scoped memory for tpu_custom_call.1']
    #allocation5 [shape = 'u8[8192]{0}', space=vmem, size = 0x2000, scoped, tag = 'input window, operand 1, single buffered']
    #allocation6 [shape = 's32[1]{0}', space=sflag, size = 0x4, scoped, tag = 'scoped memory for tpu_custom_call.1']
    #allocation7 [shape = 'u8[4096]{0}', space=vmem, size = 0x1000, scoped, tag = 'output window, operand 0, single buffered']
    %7 = vsyncpa [#allocation3], 0
    %8 = vsyncpa [#allocation6], 0
    %9 = vsyncpa [#allocation4], 0
    // Predicated region
    $region2: #{tpu_custom_call.1} parent=1 // pred_check
      _
    $region3: #{tpu_custom_call.1} parent=1 // pred_check_branch
      %11 = sbr.rel (0) target = $region5
    $region4: #{tpu_custom_call.1} parent=1 // pred_region
      %s13 = ssub.s32 128, 128
      %14 = vsyncadd [#allocation3], %s13
      %s16 = sshll.u32 [#allocation2], 4
      %s17 = int_to_ptr.vmem [resolvable:$true] %s16
      %19 = dma.hbm_to_vmem [thread:$0]  %s0, 128, %s17, [#allocation3]
    $region5: #{tpu_custom_call.1} parent=1 // pred_fallthru
      _
    // Predicated region
    $region6: #{tpu_custom_call.1} parent=1 // pred_check
      _
    $region7: #{tpu_custom_call.1} parent=1 // pred_check_branch
      %21 = sbr.rel (0) target = $region9
    $region8: #{tpu_custom_call.1} parent=1 // pred_region
      %s23 = ssub.s32 256, 256
      %24 = vsyncadd [#allocation6], %s23
      %s25 = sshll.u32 [#allocation5], 4
      %s26 = int_to_ptr.vmem [resolvable:$true] %s25
      %31 = dma.hbm_to_vmem [thread:$0]  %s1, 256, %s26, [#allocation6], 128, 128, 8
    $region9: #{tpu_custom_call.1} parent=1 // pred_fallthru
      _
    // Predicated region
    $region10: #{tpu_custom_call.1} parent=1 // pred_check
      _
    $region11: #{tpu_custom_call.1} parent=1 // pred_check_branch
      %33 = sbr.rel (0) target = $region13
    $region12: #{tpu_custom_call.1} parent=1 // pred_region
      %34 = dma.done [#allocation3], 128
    $region13: #{tpu_custom_call.1} parent=1 // pred_fallthru
      _
    // Predicated region
    $region14: #{tpu_custom_call.1} parent=1 // pred_check
      _
    $region15: #{tpu_custom_call.1} parent=1 // pred_check_branch
      %36 = sbr.rel (0) target = $region17
    $region16: #{tpu_custom_call.1} parent=1 // pred_region
      %37 = dma.done [#allocation6], 256
    $region17: #{tpu_custom_call.1} parent=1 // pred_fallthru
      _
    %v38 = vld [vmem:[#allocation2] sm:$0xff]
    %v39 = vld [vmem:[#allocation5] sm:$0xff]
    %v40 = vld [vmem:[#allocation5 + $0x8] sm:$0xff]
    %vm41 = vcmask 130048
    %v43 = vsel %vm41, %v38, 0
    %45 = vmatprep.subr.mxu0 0.0
    %46 = vmatpush1.msra.mxu0 %v39
    %47 = vmatprep.subr.mxu0 0.0
    %48 = vmatpush1.msra.mxu0 %v40
    %49 = vmatprep.subr.mxu0 0.0
    %50 = vmatpush1.msra.mxu0 0.0
    %51 = vmatprep.subr.mxu0 0.0
    %52 = vmatpush1.msra.mxu0 0.0
    %53 = vmatprep.subr.mxu0 0.0
    %54 = vmatpush1.msra.mxu0 0.0
    %55 = vmatprep.subr.mxu0 0.0
    %56 = vmatpush1.msra.mxu0 0.0
    %57 = vmatprep.subr.mxu0 0.0
    %58 = vmatpush1.msra.mxu0 0.0
    %59 = vmatprep.subr.mxu0 0.0
    %60 = vmatpush1.msra.mxu0 0.0
    %61 = vmatprep.subr.mxu0 0.0
    %62 = vmatpush1.msra.mxu0 0.0
    %63 = vmatprep.subr.mxu0 0.0
    %64 = vmatpush1.msra.mxu0 0.0
    %65 = vmatprep.subr.mxu0 0.0
    %66 = vmatpush1.msra.mxu0 0.0
    %67 = vmatprep.subr.mxu0 0.0
    %68 = vmatpush1.msra.mxu0 0.0
    %69 = vmatprep.subr.mxu0 0.0
    %70 = vmatpush1.msra.mxu0 0.0
    %71 = vmatprep.subr.mxu0 0.0
    %72 = vmatpush1.msra.mxu0 0.0
    %73 = vmatprep.subr.mxu0 0.0
    %74 = vmatpush1.msra.mxu0 0.0
    %75 = vmatprep.subr.mxu0 0.0
    %76 = vmatpush1.msra.mxu0 0.0
    %77 = vmatprep.subr.mxu0 0.0
    %78 = vmatpush1.msra.mxu0 0.0
    %79 = vmatprep.subr.mxu0 0.0
    %80 = vmatpush1.msra.mxu0 0.0
    %81 = vmatprep.subr.mxu0 0.0
    %82 = vmatpush1.msra.mxu0 0.0
    %83 = vmatprep.subr.mxu0 0.0
    %84 = vmatpush1.msra.mxu0 0.0
    %85 = vmatprep.subr.mxu0 0.0
    %86 = vmatpush1.msra.mxu0 0.0
    %87 = vmatprep.subr.mxu0 0.0
    %88 = vmatpush1.msra.mxu0 0.0
    %89 = vmatprep.subr.mxu0 0.0
    %90 = vmatpush1.msra.mxu0 0.0
    %91 = vmatprep.subr.mxu0 0.0
    %92 = vmatpush1.msra.mxu0 0.0
    %93 = vmatprep.subr.mxu0 0.0
    %94 = vmatpush1.msra.mxu0 0.0
    %95 = vmatprep.subr.mxu0 0.0
    %96 = vmatpush1.msra.mxu0 0.0
    %97 = vmatprep.subr.mxu0 0.0
    %98 = vmatpush1.msra.mxu0 0.0
    %99 = vmatprep.subr.mxu0 0.0
    %100 = vmatpush1.msra.mxu0 0.0
    %101 = vmatprep.subr.mxu0 0.0
    %102 = vmatpush1.msra.mxu0 0.0
    %103 = vmatprep.subr.mxu0 0.0
    %104 = vmatpush1.msra.mxu0 0.0
    %105 = vmatprep.subr.mxu0 0.0
    %106 = vmatpush1.msra.mxu0 0.0
    %107 = vmatprep.subr.mxu0 0.0
    %108 = vmatpush1.msra.mxu0 0.0
    %109 = vmatprep.mubr.f32.mxu0 0.0
    %110 = vmatmul.mubr.f32.gmra.mrb[0].mxu0 %v43
    %v111 = vpop.f32.mrb[0].mxu0
    %v112 = vadd.f32 0.0, %v111
    %v113 = vpop.f32.mrb[0].mxu0
    %114 = vdwg.mxu0
    %vm115 = vcmask 64512
    %116 = vst.msk [vmem:[#allocation7] sm:$0xff] %vm115, %v112
    // Predicated region
    $region18: #{tpu_custom_call.1} parent=1 // pred_check
      _
    $region19: #{tpu_custom_call.1} parent=1 // pred_check_branch
      %118 = sbr.rel (0) target = $region21
    $region20: #{tpu_custom_call.1} parent=1 // pred_region
      %s120 = ssub.s32 128, 128
      %121 = vsyncadd [#allocation4], %s120
      %s123 = sshll.u32 [#allocation7], 4
      %s124 = int_to_ptr.vmem [resolvable:$true] %s123
      %126 = dma.vmem_to_hbm [thread:$0]  %s124, 128, %s2, [#allocation4]
    $region21: #{tpu_custom_call.1} parent=1 // pred_fallthru
      _
    // Predicated region
    $region22: #{tpu_custom_call.1} parent=1 // pred_check
      _
    $region23: #{tpu_custom_call.1} parent=1 // pred_check_branch
      %128 = sbr.rel (0) target = $region25
    $region24: #{tpu_custom_call.1} parent=1 // pred_region
      %129 = dma.done [#allocation4], 128
    $region25: #{tpu_custom_call.1} parent=1 // pred_fallthru
      _
    %130 = vsyncpa [#allocation3], 1
    %131 = vsyncpa [#allocation6], 1
    %132 = vsyncpa [#allocation4], 1

</llo_original>
